<compile_context>
chip_gen: v7x
topology: tpu7x:2x2x1
jax: 0.10.0
libtpu: 0.0.40
codegen_flags: <defaults>
</compile_context>

<pallas_src>
import jax
import jax.numpy as jnp
from jax import lax
from jax.experimental import pallas as pl
from jax.experimental.pallas import tpu as pltpu


def _round_up(n, m=128):
    return ((n + m - 1) // m) * m


def _choose_time_chunk(T, max_chunk):
    """Largest divisor of T that is <= max_chunk (so the grid covers T exactly)."""
    for cand in range(min(max_chunk, T), 0, -1):
        if T % cand == 0:
            return cand
    return T


# ---------------------------------------------------------------------------
# Kernel 1: hoisted input projection  X_proj = X @ W_ih + (b_ih + b_hh)
#   All timesteps/batches flattened to rows -> one large, row-tiled MXU GEMM
#   off the serial critical path.  Operands in compute_dtype, f32 accumulation.
# ---------------------------------------------------------------------------
def _proj_kernel(x_ref, w_ref, b_ref, o_ref):
    o_ref[...] = (
        jnp.dot(x_ref[...], w_ref[...], preferred_element_type=jnp.float32)
        + b_ref[...]
    )


def input_projection(x2d, w_ih, bias, *, row_block=512):
    """x2d: (R, E), w_ih: (E, H), bias: (1, H) f32 -> (R, H) f32."""
    R, E = x2d.shape
    H = w_ih.shape[1]
    rb = min(row_block, R)
    return pl.pallas_call(
        _proj_kernel,
        out_shape=jax.ShapeDtypeStruct((R, H), jnp.float32),
        grid_spec=pltpu.PrefetchScalarGridSpec(
            num_scalar_prefetch=0,
            grid=(pl.cdiv(R, rb),),
            in_specs=[
                # Activations stream through in row tiles (double-buffered).
                pl.BlockSpec((rb, E), lambda i: (i, 0)),
                # Constant-index weight / bias blocks: single-buffer them.
                pl.BlockSpec((E, H), lambda i: (0, 0),
                             pipeline_mode=pl.Buffered(1)),
                pl.BlockSpec((1, H), lambda i: (0, 0),
                             pipeline_mode=pl.Buffered(1)),
            ],
            out_specs=pl.BlockSpec((rb, H), lambda i: (i, 0)),
        ),
        compiler_params=pltpu.CompilerParams(
            dimension_semantics=("parallel",),  # rows independent
        ),
    )(x2d, w_ih, bias)


# ---------------------------------------------------------------------------
# Kernel 2: chunked serial tanh recurrence + fused final Linear.
#   grid=(T//Tc,) over time chunks ("arbitrary"); h carried across chunks in a
#   f32 VMEM scratch.  Per step: h = tanh(x_proj[t] + (h @ W_hh)), bias already
#   folded into x_proj; matmul operands cast to the weights' dtype, f32 acc.
# ---------------------------------------------------------------------------
def _recurrence_kernel(xproj_ref, whh_ref, wfc_ref, bfc_ref, out_ref, h_ref):
    chunk = pl.program_id(0)
    Tc, B, H = xproj_ref.shape

    @pl.when(chunk == 0)
    def _():
        h_ref[...] = jnp.zeros_like(h_ref)  # init_hidden(): zeros

    w_hh = whh_ref[...]          # hoisted out of the step loop
    mm_dtype = w_hh.dtype        # compute dtype for MXU operands

    def step(t, h):
        # h_t = tanh(x_proj[t] + h_{t-1} @ W_hh); h stays f32, operands cast.
        return jnp.tanh(
            xproj_ref[t]
            + jnp.dot(h.astype(mm_dtype), w_hh,
                      preferred_element_type=jnp.float32)
        )

    # Bounded unroll keeps LLO scheduling visibility without vreg-spill blowup.
    h_ref[...] = lax.fori_loop(0, Tc, step, h_ref[...], unroll=min(Tc, 8))

    @pl.when(chunk == pl.num_programs(0) - 1)
    def _():
        out_ref[...] = (
            jnp.dot(h_ref[...].astype(mm_dtype), wfc_ref[...],
                    preferred_element_type=jnp.float32)
            + bfc_ref[...]
        ).astype(out_ref.dtype)


def rnn_recurrence(x_proj, w_hh, w_fc, b_fc, *, time_chunk=32):
    """x_proj: (T, B, H) f32 -> logits (B, O) f32."""
    T, B, H = x_proj.shape
    O = w_fc.shape[1]
    Tc = _choose_time_chunk(T, time_chunk)
    return pl.pallas_call(
        _recurrence_kernel,
        out_shape=jax.ShapeDtypeStruct((B, O), jnp.float32),
        grid_spec=pltpu.PrefetchScalarGridSpec(
            num_scalar_prefetch=0,
            grid=(T // Tc,),
            in_specs=[
                # x_proj streamed per time chunk (double-buffered by default so
                # the next chunk's DMA hides under the serial compute).
                pl.BlockSpec((Tc, B, H), lambda c: (c, 0, 0)),
                # Constant-index weights / bias: single-buffered.
                pl.BlockSpec((H, H), lambda c: (0, 0),
                             pipeline_mode=pl.Buffered(1)),
                pl.BlockSpec((H, O), lambda c: (0, 0),
                             pipeline_mode=pl.Buffered(1)),
                pl.BlockSpec((1, O), lambda c: (0, 0),
                             pipeline_mode=pl.Buffered(1)),
            ],
            out_specs=pl.BlockSpec((B, O), lambda c: (0, 0)),
            scratch_shapes=[pltpu.VMEM((B, H), jnp.float32)],  # carried h
        ),
        compiler_params=pltpu.CompilerParams(
            dimension_semantics=("arbitrary",),  # recurrence is sequential
        ),
    )(x_proj, w_hh, w_fc, b_fc)


def rnn_forward(tokens, embeddings, w_ih, w_hh, b_ih, b_hh, w_fc, b_fc, *,
                compute_dtype=jnp.bfloat16, time_chunk=32, row_block=512):
    """tokens: (B, T) int32. Returns (B, output_size) float32."""
    B, T = tokens.shape
    E = embeddings.shape[1]
    H = w_hh.shape[0]
    O = w_fc.shape[1]

    # Zero-pad lane dims to multiples of 128 (exact; see header comment).
    Ep, Hp, Op = _round_up(E), _round_up(H), _round_up(O)
    emb_p = jnp.pad(embeddings.astype(jnp.float32), ((0, 0), (0, Ep - E)))
    w_ih_p = jnp.pad(w_ih.astype(jnp.float32), ((0, Ep - E), (0, Hp - H)))
    w_hh_p = jnp.pad(w_hh.astype(jnp.float32), ((0, Hp - H), (0, Hp - H)))
    w_fc_p = jnp.pad(w_fc.astype(jnp.float32), ((0, Hp - H), (0, Op - O)))
    bias_p = jnp.pad((b_ih + b_hh).astype(jnp.float32).reshape(1, H),
                     ((0, 0), (0, Hp - H)))
    b_fc_p = jnp.pad(b_fc.astype(jnp.float32).reshape(1, O),
                     ((0, 0), (0, Op - O)))

    # Embedding gather directly in time-major flattened-row order: (T*B, Ep).
    x_tm = jnp.take(emb_p, tokens.T.reshape(-1), axis=0)

    # Hoisted input projection: one (T*B, Ep) x (Ep, Hp) GEMM for all timesteps
    # (compute_dtype operands, f32 accumulation, bias fused).
    x_proj2d = input_projection(
        x_tm.astype(compute_dtype), w_ih_p.astype(compute_dtype), bias_p,
        row_block=row_block,
    )
    x_proj = x_proj2d.reshape(T, B, Hp)  # free: leading-dim metadata reshape

    out = rnn_recurrence(
        x_proj,
        w_hh_p.astype(compute_dtype),
        w_fc_p.astype(compute_dtype),
        b_fc_p,
        time_chunk=time_chunk,
    )
    return out[:, :O]


def reference_forward(tokens, embeddings, w_ih, w_hh, b_ih, b_hh, w_fc, b_fc):
    """Pure-JAX f32 reference matching the PyTorch module's semantics."""
    emb = jnp.take(embeddings, tokens, axis=0)  # (B, T, E)
    B, T, E = emb.shape
    H = w_hh.shape[0]
    h = jnp.zeros((B, H), jnp.float32)
    for t in range(T):
        h = jnp.tanh(emb[:, t, :] @ w_ih + h @ w_hh + b_ih + b_hh)
    return h @ w_fc + b_fc


if __name__ == "__main__":
    # Small, deterministic shapes consistent with the module's forward.
    vocab_size = 16
    emb_size = 32
    hidden_size = 32
    output_size = 4
    padding_idx = 0
    B, T = 2, 8

    key = jax.random.PRNGKey(0)
    k_emb, k_wih, k_whh, k_bih, k_bhh, k_wfc, k_bfc, k_tok = jax.random.split(key, 8)

    # Pretrained embeddings (row at padding_idx zeroed).
    embeddings = jax.random.normal(k_emb, (vocab_size, emb_size), jnp.float32)
    embeddings = embeddings.at[padding_idx].set(0.0)

    # nn.RNN / nn.Linear-style uniform(-1/sqrt(H), 1/sqrt(H)) init, stored
    # transposed vs. PyTorch so the kernels compute x @ W.
    bound = 1.0 / jnp.sqrt(hidden_size)
    w_ih = jax.random.uniform(k_wih, (emb_size, hidden_size), jnp.float32, -bound, bound)
    w_hh = jax.random.uniform(k_whh, (hidden_size, hidden_size), jnp.float32, -bound, bound)
    b_ih = jax.random.uniform(k_bih, (hidden_size,), jnp.float32, -bound, bound)
    b_hh = jax.random.uniform(k_bhh, (hidden_size,), jnp.float32, -bound, bound)
    w_fc = jax.random.uniform(k_wfc, (hidden_size, output_size), jnp.float32, -bound, bound)
    b_fc = jax.random.uniform(k_bfc, (output_size,), jnp.float32, -bound, bound)

    # Token ids (include a padding token to exercise padding_idx behavior).
    tokens = jax.random.randint(k_tok, (B, T), 0, vocab_size, jnp.int32)
    tokens = tokens.at[0, 0].set(padding_idx)

    ref = reference_forward(tokens, embeddings, w_ih, w_hh, b_ih, b_hh, w_fc, b_fc)

    # 1) f32 operands, time_chunk=4 -> 2 chunks: exercises the h carry scratch,
    #    tight numerical match with the f32 reference.
    out_f32 = rnn_forward(tokens, embeddings, w_ih, w_hh, b_ih, b_hh, w_fc, b_fc,
                          compute_dtype=jnp.float32, time_chunk=4)
    out_f32 = jax.block_until_ready(out_f32)
    assert out_f32.shape == (B, output_size)
    assert jnp.allclose(out_f32, ref, atol=2e-5, rtol=2e-5), (out_f32, ref)

    # 2) bf16 matmul operands (f32-carried h / f32 accumulation): perf config,
    #    looser tolerance vs. the f32 reference.
    out_bf16 = rnn_forward(tokens, embeddings, w_ih, w_hh, b_ih, b_hh, w_fc, b_fc,
                           compute_dtype=jnp.bfloat16, time_chunk=4)
    out_bf16 = jax.block_until_ready(out_bf16)
    assert out_bf16.shape == (B, output_size)
    assert jnp.allclose(out_bf16, ref, atol=5e-2, rtol=5e-2), (out_bf16, ref)

    print("KERNEL_OK")
</pallas_src>

<mosaic_0001>
module attributes {stable_mosaic.version = 11 : i64} {
  func.func @_proj_kernel(%arg0: i32, %arg1: memref<16x128xf32, #tpu.memory_space<vmem>>, %arg2: memref<128x128xf32, #tpu.memory_space<vmem>>, %arg3: memref<1x128xf32, #tpu.memory_space<vmem>>, %arg4: memref<16x128xf32, #tpu.memory_space<vmem>>) attributes {dimension_semantics = [#tpu.dimension_semantics<parallel>], iteration_bounds = array<i64: 1>, scalar_prefetch = 0 : i64, scratch_operands = 0 : i64, tpu.core_type = #tpu.core_type<tc>, window_params = [{transform_indices = @transform_0, window_bounds = array<i64: 16, 128>}, {pipeline_mode = #tpu.pipeline_mode<synchronous>, transform_indices = @transform_1, window_bounds = array<i64: 128, 128>}, {pipeline_mode = #tpu.pipeline_mode<synchronous>, transform_indices = @transform_2, window_bounds = array<i64: 1, 128>}, {transform_indices = @transform_3, window_bounds = array<i64: 16, 128>}]} {
    %c0 = arith.constant 0 : index
    %c0_0 = arith.constant 0 : index
    %0 = vector.load %arg1[%c0, %c0_0] : memref<16x128xf32, #tpu.memory_space<vmem>>, vector<16x128xf32>
    %c0_1 = arith.constant 0 : index
    %c0_2 = arith.constant 0 : index
    %1 = vector.load %arg2[%c0_1, %c0_2] : memref<128x128xf32, #tpu.memory_space<vmem>>, vector<128x128xf32>
    %cst = arith.constant dense<0.000000e+00> : vector<16x128xf32>
    %2 = tpu.matmul %0, %1, %cst {dimension_numbers = #tpu.dot_dimension_numbers<[1], [0], [0], [1], [0, 0, 1, 1], [], []>} : vector<16x128xf32>, vector<128x128xf32>, vector<16x128xf32> -> vector<16x128xf32>
    %c0_3 = arith.constant 0 : index
    %c0_4 = arith.constant 0 : index
    %3 = vector.load %arg3[%c0_3, %c0_4] : memref<1x128xf32, #tpu.memory_space<vmem>>, vector<1x128xf32>
    %4 = vector.broadcast %3 : vector<1x128xf32> to vector<16x128xf32>
    %5 = arith.addf %2, %4 : vector<16x128xf32>
    %c0_5 = arith.constant 0 : index
    %c0_6 = arith.constant 0 : index
    %6 = vector.load %arg4[%c0_5, %c0_6] : memref<16x128xf32, #tpu.memory_space<vmem>>, vector<16x128xf32>
    tpu.vector_store %arg4[%c0_5, %c0_6], %5 {strides = array<i32>} : memref<16x128xf32, #tpu.memory_space<vmem>>, vector<16x128xf32>,
    return
  }
  func.func @transform_0(%arg0: i32) -> (i32, i32) {
    %c0_i32 = arith.constant 0 : i32
    %c0_i32_0 = arith.constant 0 : i32
    return %arg0, %c0_i32 : i32, i32
  }
  func.func @transform_1(%arg0: i32) -> (i32, i32) {
    %c0_i32 = arith.constant 0 : i32
    %c0_i32_0 = arith.constant 0 : i32
    %c0_i32_1 = arith.constant 0 : i32
    return %c0_i32, %c0_i32_0 : i32, i32
  }
  func.func @transform_2(%arg0: i32) -> (i32, i32) {
    %c0_i32 = arith.constant 0 : i32
    %c0_i32_0 = arith.constant 0 : i32
    %c0_i32_1 = arith.constant 0 : i32
    return %c0_i32, %c0_i32_0 : i32, i32
  }
  func.func @transform_3(%arg0: i32) -> (i32, i32) {
    %c0_i32 = arith.constant 0 : i32
    %c0_i32_0 = arith.constant 0 : i32
    return %arg0, %c0_i32 : i32, i32
  }
}

</mosaic_0001>

<llo_original>
// kernel: tpu_custom_call.1
$region0: #{tpu_custom_call.1}
  #allocation0 [shape = 'u32[]', space=smem, size = 0x4, offset = 0x4, fixed_abs, tag = 'smem constant byte address 0x4 - core index']
  #allocation1 [shape = 'u32[144,128]{1,0:T(1,128)}', space=vmem, size = 0x12000, scoped, tag = 'internal scratch']
  %s0 = inlined_call_operand.hbm [shape: f32[16,128], index: 0, kind: input, shape index: {}]
  %s1 = inlined_call_operand.hbm [shape: f32[128,128], index: 1, kind: input, shape index: {}]
  %s2 = inlined_call_operand.vmem [shape: f32[1,128], index: 2, kind: input, shape index: {}]
  %s3 = inlined_call_operand.hbm [shape: f32[16,128], index: 3, kind: output, shape index: {}]
  %s4 = sld [smem:[#allocation0]]
  $region30: #{tpu_custom_call.1} parent=0
    _
  %s6 = ssub.s32 1, %s4
  %s7 = scalar_select 0, %s6, %s4
  $region1: #{tpu_custom_call.1} parent=0
    #allocation2 [shape = 'u8[8192]{0}', space=vmem, size = 0x2000, scoped, tag = 'input window, operand 0, single buffered']
    #allocation3 [shape = 's32[1]{0}', space=sflag, size = 0x4, scoped, tag = 'scoped memory for tpu_custom_call.1']
    #allocation4 [shape = 's32[1]{0}', space=sflag, size = 0x4, scoped, tag = 'scoped memory for tpu_custom_call.1']
    #allocation5 [shape = 'u8[65536]{0}', space=vmem, size = 0x10000, scoped, tag = 'input window, operand 1, single buffered']
    #allocation6 [shape = 's32[1]{0}', space=sflag, size = 0x4, scoped, tag = 'scoped memory for tpu_custom_call.1']
    #allocation7 [shape = 'u8[8192]{0}', space=vmem, size = 0x2000, scoped, tag = 'output window, operand 0, single buffered']
    %8 = vsyncpa [#allocation3], 0
    %9 = vsyncpa [#allocation6], 0
    %10 = vsyncpa [#allocation4], 0
    // Predicated region
    $region2: #{tpu_custom_call.1} parent=1 // pred_check
      _
    $region3: #{tpu_custom_call.1} parent=1 // pred_check_branch
      %12 = sbr.rel (0) target = $region5
    $region4: #{tpu_custom_call.1} parent=1 // pred_region
      %s14 = ssub.s32 256, 256
      %15 = vsyncadd [#allocation3], %s14
      %s16 = sshll.u32 [#allocation2], 4
      %s17 = int_to_ptr.vmem [resolvable:$true] %s16
      %22 = dma.hbm_to_vmem [thread:$0]  %s0, 256, %s17, [#allocation3], 128, 128, 8
    $region5: #{tpu_custom_call.1} parent=1 // pred_fallthru
      _
    // Predicated region
    $region6: #{tpu_custom_call.1} parent=1 // pred_check
      _
    $region7: #{tpu_custom_call.1} parent=1 // pred_check_branch
      %24 = sbr.rel (0) target = $region9
    $region8: #{tpu_custom_call.1} parent=1 // pred_region
      %s26 = ssub.s32 2048, 2048
      %27 = vsyncadd [#allocation6], %s26
      %s28 = sshll.u32 [#allocation5], 4
      %s29 = int_to_ptr.vmem [resolvable:$true] %s28
      %34 = dma.hbm_to_vmem [thread:$0]  %s1, 2048, %s29, [#allocation6], 128, 128, 8
    $region9: #{tpu_custom_call.1} parent=1 // pred_fallthru
      _
    // Predicated region
    $region10: #{tpu_custom_call.1} parent=1 // pred_check
      _
    $region11: #{tpu_custom_call.1} parent=1 // pred_check_branch
      %36 = sbr.rel (0) target = $region13
    $region12: #{tpu_custom_call.1} parent=1 // pred_region
      _
    $region13: #{tpu_custom_call.1} parent=1 // pred_fallthru
      _
    // Predicated region
    $region14: #{tpu_custom_call.1} parent=1 // pred_check
      _
    $region15: #{tpu_custom_call.1} parent=1 // pred_check_branch
      %38 = sbr.rel (0) target = $region17
    $region16: #{tpu_custom_call.1} parent=1 // pred_region
      %39 = dma.done [#allocation3], 256
    $region17: #{tpu_custom_call.1} parent=1 // pred_fallthru
      _
    // Predicated region
    $region18: #{tpu_custom_call.1} parent=1 // pred_check
      _
    $region19: #{tpu_custom_call.1} parent=1 // pred_check_branch
      %41 = sbr.rel (0) target = $region21
    $region20: #{tpu_custom_call.1} parent=1 // pred_region
      %42 = dma.done [#allocation6], 2048
    $region21: #{tpu_custom_call.1} parent=1 // pred_fallthru
      _
    %v43 = vld [vmem:[#allocation2] sm:$0xff]
    %v44 = vld [vmem:[#allocation2 + $0x8] sm:$0xff]
    %v45 = vld [vmem:[#allocation5] sm:$0xff]
    %v46 = vld [vmem:[#allocation5 + $0x8] sm:$0xff]
    %v47 = vld [vmem:[#allocation5 + $0x10] sm:$0xff]
    %v48 = vld [vmem:[#allocation5 + $0x18] sm:$0xff]
    %v49 = vld [vmem:[#allocation5 + $0x20] sm:$0xff]
    %v50 = vld [vmem:[#allocation5 + $0x28] sm:$0xff]
    %v51 = vld [vmem:[#allocation5 + $0x30] sm:$0xff]
    %v52 = vld [vmem:[#allocation5 + $0x38] sm:$0xff]
    %v53 = vld [vmem:[#allocation5 + $0x40] sm:$0xff]
    %v54 = vld [vmem:[#allocation5 + $0x48] sm:$0xff]
    %v55 = vld [vmem:[#allocation5 + $0x50] sm:$0xff]
    %v56 = vld [vmem:[#allocation5 + $0x58] sm:$0xff]
    %v57 = vld [vmem:[#allocation5 + $0x60] sm:$0xff]
    %v58 = vld [vmem:[#allocation5 + $0x68] sm:$0xff]
    %v59 = vld [vmem:[#allocation5 + $0x70] sm:$0xff]
    %v60 = vld [vmem:[#allocation5 + $0x78] sm:$0xff]
    %v61 = vld [vmem:[%s2] sm:$0x1]
    %v63 = vlaneseq
    %v64 = vshrl.u32 %v63, 7
    %v65 = vsub.s32 0, %v64
    %v66 = vrot.slane %v61, %v65
    %68 = vmatprep.subr.mxu0 0.0
    %69 = vmatpush1.msra.mxu0 %v45
    %70 = vmatprep.subr.mxu0 0.0
    %71 = vmatpush1.msra.mxu0 %v46
    %72 = vmatprep.subr.mxu0 0.0
    %73 = vmatpush1.msra.mxu0 %v47
    %74 = vmatprep.subr.mxu0 0.0
    %75 = vmatpush1.msra.mxu0 %v48
    %76 = vmatprep.subr.mxu0 0.0
    %77 = vmatpush1.msra.mxu0 %v49
    %78 = vmatprep.subr.mxu0 0.0
    %79 = vmatpush1.msra.mxu0 %v50
    %80 = vmatprep.subr.mxu0 0.0
    %81 = vmatpush1.msra.mxu0 %v51
    %82 = vmatprep.subr.mxu0 0.0
    %83 = vmatpush1.msra.mxu0 %v52
    %84 = vmatprep.subr.mxu0 0.0
    %85 = vmatpush1.msra.mxu0 %v53
    %86 = vmatprep.subr.mxu0 0.0
    %87 = vmatpush1.msra.mxu0 %v54
    %88 = vmatprep.subr.mxu0 0.0
    %89 = vmatpush1.msra.mxu0 %v55
    %90 = vmatprep.subr.mxu0 0.0
    %91 = vmatpush1.msra.mxu0 %v56
    %92 = vmatprep.subr.mxu0 0.0
    %93 = vmatpush1.msra.mxu0 %v57
    %94 = vmatprep.subr.mxu0 0.0
    %95 = vmatpush1.msra.mxu0 %v58
    %96 = vmatprep.subr.mxu0 0.0
    %97 = vmatpush1.msra.mxu0 %v59
    %98 = vmatprep.subr.mxu0 0.0
    %99 = vmatpush1.msra.mxu0 %v60
    %100 = vmatprep.subr.mxu0 0.0
    %101 = vmatpush1.msra.mxu0 0.0
    %102 = vmatprep.subr.mxu0 0.0
    %103 = vmatpush1.msra.mxu0 0.0
    %104 = vmatprep.subr.mxu0 0.0
    %105 = vmatpush1.msra.mxu0 0.0
    %106 = vmatprep.subr.mxu0 0.0
    %107 = vmatpush1.msra.mxu0 0.0
    %108 = vmatprep.subr.mxu0 0.0
    %109 = vmatpush1.msra.mxu0 0.0
    %110 = vmatprep.subr.mxu0 0.0
    %111 = vmatpush1.msra.mxu0 0.0
    %112 = vmatprep.subr.mxu0 0.0
    %113 = vmatpush1.msra.mxu0 0.0
    %114 = vmatprep.subr.mxu0 0.0
    %115 = vmatpush1.msra.mxu0 0.0
    %116 = vmatprep.subr.mxu0 0.0
    %117 = vmatpush1.msra.mxu0 0.0
    %118 = vmatprep.subr.mxu0 0.0
    %119 = vmatpush1.msra.mxu0 0.0
    %120 = vmatprep.subr.mxu0 0.0
    %121 = vmatpush1.msra.mxu0 0.0
    %122 = vmatprep.subr.mxu0 0.0
    %123 = vmatpush1.msra.mxu0 0.0
    %124 = vmatprep.subr.mxu0 0.0
    %125 = vmatpush1.msra.mxu0 0.0
    %126 = vmatprep.subr.mxu0 0.0
    %127 = vmatpush1.msra.mxu0 0.0
    %128 = vmatprep.subr.mxu0 0.0
    %129 = vmatpush1.msra.mxu0 0.0
    %130 = vmatprep.subr.mxu0 0.0
    %131 = vmatpush1.msra.mxu0 0.0
    %132 = vmatprep.mubr.f32.mxu0 0.0
    %133 = vmatmul.mubr.f32.gmra.mrb[0].mxu0 %v43
    %v134 = vpop.f32.mrb[0].mxu0
    %v135 = vadd.f32 %v66, %v134
    %v136 = vpop.f32.mrb[0].mxu0
    %137 = vmatprep.mubr.f32.mxu0 0.0
    %138 = vmatmul.mubr.f32.gmra.mrb[0].mxu0 %v44
    %v139 = vpop.f32.mrb[0].mxu0
    %v140 = vadd.f32 %v66, %v139
    %v141 = vpop.f32.mrb[0].mxu0
    %142 = vdwg.mxu0
    %143 = vst [vmem:[#allocation7] sm:$0xff] %v135
    %144 = vst [vmem:[#allocation7 + $0x8] sm:$0xff] %v140
    // Predicated region
    $region22: #{tpu_custom_call.1} parent=1 // pred_check
      _
    $region23: #{tpu_custom_call.1} parent=1 // pred_check_branch
      %146 = sbr.rel (0) target = $region25
    $region24: #{tpu_custom_call.1} parent=1 // pred_region
      %s148 = ssub.s32 256, 256
      %149 = vsyncadd [#allocation4], %s148
      %s150 = sshll.u32 [#allocation7], 4
      %s151 = int_to_ptr.vmem [resolvable:$true] %s150
      %156 = dma.vmem_to_hbm [thread:$0]  %s151, 256, %s3, [#allocation4], 128, 128, 8
    $region25: #{tpu_custom_call.1} parent=1 // pred_fallthru
      _
    // Predicated region
    $region26: #{tpu_custom_call.1} parent=1 // pred_check
      _
    $region27: #{tpu_custom_call.1} parent=1 // pred_check_branch
      %158 = sbr.rel (0) target = $region29
    $region28: #{tpu_custom_call.1} parent=1 // pred_region
      %159 = dma.done [#allocation4], 256
    $region29: #{tpu_custom_call.1} parent=1 // pred_fallthru
      _
    %160 = vsyncpa [#allocation3], 1
    %161 = vsyncpa [#allocation6], 1
    %162 = vsyncpa [#allocation4], 1

</llo_original>
